<compile_context>
chip_gen: v5e
topology: v5e:2x2
jax: 0.10.0
libtpu: 0.0.40
codegen_flags: <defaults>
</compile_context>

<pallas_src>
import jax
import jax.numpy as jnp
from jax import lax
from jax.experimental import pallas as pl
from jax.experimental.pallas import tpu as pltpu

_LANE = 128
_TARGET_X_TILE_BYTES = 2 * 1024 * 1024  # ~2 MiB x tile per grid step
_UNROLL_C = 128                         # fully unroll the channel loop up to this C


def _round_up(a, m):
    return ((a + m - 1) // m) * m


def _choose_r_tile(r_total, c, x_itemsize, n_batch):
    """Rows of 128 lanes per spatial tile (sublane-dense, multiple of the dtype quantum)."""
    sub = max(8, 32 // x_itemsize)  # 8 for f32, 16 for bf16, 32 for int8/fp8
    r = _TARGET_X_TILE_BYTES // (c * _LANE * x_itemsize)
    r = max(sub, (r // sub) * sub)
    # Guarantee >= 2 spatial tiles when the batch axis alone cannot feed both v7x cores.
    if n_batch == 1 and r_total > sub:
        r = min(r, _round_up(pl.cdiv(r_total, 2), sub))
    if r >= r_total:
        return r_total  # full-extent block: exempt from the 8-sublane divisibility rule
    return r


def _seg_predict_kernel(w_ref, b_ref, x_ref, o_ref):
    # w_ref: (C,)        f32 SMEM  (1x1-conv weights)
    # b_ref: (1,)        f32 SMEM  (bias)
    # x_ref: (C, R, 128) VMEM      (one batch element, one spatial tile)
    # o_ref: (R, 128)    VMEM
    c_dim = x_ref.shape[0]

    def chan(c):
        # Indexing the major (channel) axis gives a dense (R, 128) tile: full
        # sublane/lane vld, scalar-broadcast multiply on the VPU, one live acc.
        return x_ref[c].astype(jnp.float32) * w_ref[c]

    if c_dim <= _UNROLL_C:
        acc = chan(0)
        for c in range(1, c_dim):
            acc = acc + chan(c)
    else:
        acc = lax.fori_loop(1, c_dim, lambda c, a: a + chan(c), chan(0))

    o_ref[...] = (acc + b_ref[0]).astype(o_ref.dtype)


def seg_branch_forward(x, weight, bias):
    """SegBranch.forward for upsample_rate=1 (Identity neck + Conv2d(C, 1, 1)).

    Args:
      x:      (N, C, H, W)  NCHW activations (f32 or bf16)
      weight: (1, C, 1, 1)  Conv2d(C, 1, 1) weight
      bias:   (1,)          Conv2d bias
    Returns:
      (N, 1, H, W) with x.dtype
    """
    N, C, H, W = x.shape
    HW = H * W
    x_itemsize = jnp.dtype(x.dtype).itemsize

    hw_pad = _round_up(HW, _LANE)
    r_total = hw_pad // _LANE

    x_flat = x.reshape(N, C, HW)
    if hw_pad != HW:
        # TODO(synk): the pad costs one extra HBM pass; an in-kernel lane mask on the
        # ragged last 128-column group would avoid it.
        x_flat = jnp.pad(x_flat, ((0, 0), (0, 0), (0, hw_pad - HW)))
    x4 = x_flat.reshape(N, C, r_total, _LANE)  # row-major split -> free reshape

    r_tile = _choose_r_tile(r_total, C, x_itemsize, N)
    num_r_tiles = pl.cdiv(r_total, r_tile)

    # Explicit, footprint-derived VMEM limit (double-buffered x + out tiles).
    x_tile_bytes = C * r_tile * _LANE * x_itemsize
    out_tile_bytes = r_tile * _LANE * x_itemsize
    vmem_needed = 2 * (x_tile_bytes + out_tile_bytes)
    vmem_limit = int(min(max(2 * vmem_needed, 16 * 2 ** 20), 48 * 2 ** 20))

    cost = pl.CostEstimate(
        flops=2 * N * C * HW,
        transcendentals=0,
        bytes_accessed=N * C * HW * x_itemsize + N * HW * x_itemsize + (C + 1) * 4,
    )

    out3 = pl.pallas_call(
        _seg_predict_kernel,
        out_shape=jax.ShapeDtypeStruct((N, r_total, _LANE), x.dtype),
        grid_spec=pltpu.PrefetchScalarGridSpec(
            num_scalar_prefetch=0,
            grid=(N, num_r_tiles),
            in_specs=[
                pl.BlockSpec(memory_space=pltpu.MemorySpace.SMEM),  # weights (C,)
                pl.BlockSpec(memory_space=pltpu.MemorySpace.SMEM),  # bias   (1,)
                pl.BlockSpec((None, C, r_tile, _LANE), lambda n, t: (n, 0, t, 0)),
            ],
            out_specs=pl.BlockSpec((None, r_tile, _LANE), lambda n, t: (n, t, 0)),
        ),
        compiler_params=pltpu.CompilerParams(
            dimension_semantics=("parallel", "parallel"),
            vmem_limit_bytes=vmem_limit,
        ),
        cost_estimate=cost,
    )(weight.reshape(C).astype(jnp.float32), bias.astype(jnp.float32), x4)

    out_flat = out3.reshape(N, hw_pad)
    if hw_pad != HW:
        out_flat = out_flat[:, :HW]
    return out_flat.reshape(N, 1, H, W)


if __name__ == "__main__":
    # Small shapes consistent with the module: batch=2, channels=4, spatial=16.
    N, C, H, W = 2, 4, 16, 16

    key = jax.random.PRNGKey(0)
    kx, kw, kb = jax.random.split(key, 3)

    x = jax.random.normal(kx, (N, C, H, W), dtype=jnp.float32)
    # Deterministic synthetic Conv2d(C, 1, 1) parameters.
    weight = jax.random.normal(kw, (1, C, 1, 1), dtype=jnp.float32) * 0.1
    bias = jax.random.normal(kb, (1,), dtype=jnp.float32) * 0.1

    out = seg_branch_forward(x, weight, bias)
    out = jax.block_until_ready(out)

    # Pure-JAX reference of the 1x1 conv (NCHW).
    ref = jnp.einsum("nchw,oc->nohw", x, weight.reshape(1, C)) + bias.reshape(1, 1, 1, 1)

    assert out.shape == (N, 1, H, W), out.shape
    assert jnp.allclose(out, ref, atol=1e-5, rtol=1e-5), float(jnp.max(jnp.abs(out - ref)))

    print("KERNEL_OK")
</pallas_src>

<mosaic_0001>
module attributes {stable_mosaic.version = 11 : i64} {
  func.func @_seg_predict_kernel(%arg0: i32, %arg1: i32, %arg2: memref<4xf32, #tpu.memory_space<smem>>, %arg3: memref<1xf32, #tpu.memory_space<smem>>, %arg4: memref<1x4x2x128xf32, #tpu.memory_space<vmem>>, %arg5: memref<1x2x128xf32, #tpu.memory_space<vmem>>) attributes {dimension_semantics = [#tpu.dimension_semantics<parallel>, #tpu.dimension_semantics<parallel>], iteration_bounds = array<i64: 2, 1>, scalar_prefetch = 0 : i64, scratch_operands = 0 : i64, tpu.core_type = #tpu.core_type<tc>, window_params = [{transform_indices = @transform_0, window_bounds = array<i64: 4>}, {transform_indices = @transform_1, window_bounds = array<i64: 1>}, {transform_indices = @transform_2, window_bounds = array<i64: 1, 4, 2, 128>}, {transform_indices = @transform_3, window_bounds = array<i64: 1, 2, 128>}]} {
    %c0 = arith.constant 0 : index
    %c0_0 = arith.constant 0 : index
    %c0_1 = arith.constant 0 : index
    %c0_2 = arith.constant 0 : index
    %0 = vector.load %arg4[%c0, %c0_0, %c0_1, %c0_2] : memref<1x4x2x128xf32, #tpu.memory_space<vmem>>, vector<1x1x2x128xf32>
    %1 = vector.shape_cast %0 : vector<1x1x2x128xf32> to vector<2x128xf32>
    %c0_3 = arith.constant 0 : index
    %2 = memref.load %arg2[%c0_3] : memref<4xf32, #tpu.memory_space<smem>>
    %3 = vector.broadcast %2 : f32 to vector<2x128xf32>
    %4 = arith.mulf %1, %3 : vector<2x128xf32>
    %c0_4 = arith.constant 0 : index
    %c1 = arith.constant 1 : index
    %c0_5 = arith.constant 0 : index
    %c0_6 = arith.constant 0 : index
    %5 = vector.load %arg4[%c0_4, %c1, %c0_5, %c0_6] : memref<1x4x2x128xf32, #tpu.memory_space<vmem>>, vector<1x1x2x128xf32>
    %6 = vector.shape_cast %5 : vector<1x1x2x128xf32> to vector<2x128xf32>
    %c1_7 = arith.constant 1 : index
    %7 = memref.load %arg2[%c1_7] : memref<4xf32, #tpu.memory_space<smem>>
    %8 = vector.broadcast %7 : f32 to vector<2x128xf32>
    %9 = arith.mulf %6, %8 : vector<2x128xf32>
    %10 = arith.addf %4, %9 : vector<2x128xf32>
    %c0_8 = arith.constant 0 : index
    %c2 = arith.constant 2 : index
    %c0_9 = arith.constant 0 : index
    %c0_10 = arith.constant 0 : index
    %11 = vector.load %arg4[%c0_8, %c2, %c0_9, %c0_10] : memref<1x4x2x128xf32, #tpu.memory_space<vmem>>, vector<1x1x2x128xf32>
    %12 = vector.shape_cast %11 : vector<1x1x2x128xf32> to vector<2x128xf32>
    %c2_11 = arith.constant 2 : index
    %13 = memref.load %arg2[%c2_11] : memref<4xf32, #tpu.memory_space<smem>>
    %14 = vector.broadcast %13 : f32 to vector<2x128xf32>
    %15 = arith.mulf %12, %14 : vector<2x128xf32>
    %16 = arith.addf %10, %15 : vector<2x128xf32>
    %c0_12 = arith.constant 0 : index
    %c3 = arith.constant 3 : index
    %c0_13 = arith.constant 0 : index
    %c0_14 = arith.constant 0 : index
    %17 = vector.load %arg4[%c0_12, %c3, %c0_13, %c0_14] : memref<1x4x2x128xf32, #tpu.memory_space<vmem>>, vector<1x1x2x128xf32>
    %18 = vector.shape_cast %17 : vector<1x1x2x128xf32> to vector<2x128xf32>
    %c3_15 = arith.constant 3 : index
    %19 = memref.load %arg2[%c3_15] : memref<4xf32, #tpu.memory_space<smem>>
    %20 = vector.broadcast %19 : f32 to vector<2x128xf32>
    %21 = arith.mulf %18, %20 : vector<2x128xf32>
    %22 = arith.addf %16, %21 : vector<2x128xf32>
    %c0_16 = arith.constant 0 : index
    %23 = memref.load %arg3[%c0_16] : memref<1xf32, #tpu.memory_space<smem>>
    %24 = vector.broadcast %23 : f32 to vector<2x128xf32>
    %25 = arith.addf %22, %24 : vector<2x128xf32>
    %c0_17 = arith.constant 0 : index
    %c0_18 = arith.constant 0 : index
    %c0_19 = arith.constant 0 : index
    %26 = vector.load %arg5[%c0_17, %c0_18, %c0_19] : memref<1x2x128xf32, #tpu.memory_space<vmem>>, vector<1x2x128xf32>
    %27 = vector.shape_cast %26 : vector<1x2x128xf32> to vector<2x128xf32>
    %28 = vector.shape_cast %25 : vector<2x128xf32> to vector<1x2x128xf32>
    tpu.vector_store %arg5[%c0_17, %c0_18, %c0_19], %28 {strides = array<i32>} : memref<1x2x128xf32, #tpu.memory_space<vmem>>, vector<1x2x128xf32>,
    return
  }
  func.func @transform_0(%arg0: i32, %arg1: i32) -> i32 {
    %c0_i32 = arith.constant 0 : i32
    %c0_i32_0 = arith.constant 0 : i32
    return %c0_i32 : i32
  }
  func.func @transform_1(%arg0: i32, %arg1: i32) -> i32 {
    %c0_i32 = arith.constant 0 : i32
    %c0_i32_0 = arith.constant 0 : i32
    return %c0_i32 : i32
  }
  func.func @transform_2(%arg0: i32, %arg1: i32) -> (i32, i32, i32, i32) {
    %c0_i32 = arith.constant 0 : i32
    %c0_i32_0 = arith.constant 0 : i32
    %c0_i32_1 = arith.constant 0 : i32
    return %arg0, %c0_i32, %arg1, %c0_i32_0 : i32, i32, i32, i32
  }
  func.func @transform_3(%arg0: i32, %arg1: i32) -> (i32, i32, i32) {
    %c0_i32 = arith.constant 0 : i32
    %c0_i32_0 = arith.constant 0 : i32
    return %arg0, %arg1, %c0_i32 : i32, i32, i32
  }
}

</mosaic_0001>

<llo_original>
// kernel: tpu_custom_call.1
$region0: #{tpu_custom_call.1}
  #allocation0 [shape = 'u32[]', space=smem, size = 0x4, offset = 0x4, fixed_abs, tag = 'smem constant byte address 0x4 - core index']
  #allocation1 [shape = 'u32[72,128]{1,0:T(1,128)}', space=vmem, size = 0x9000, scoped, tag = 'internal scratch']
  #allocation2 [shape = 'f32[1]{0:T(128)S(6)}', space=smem, size = 0x200, scoped, tag = 'scoped memory for tpu_custom_call.1']
  %s0 = inlined_call_operand.vmem [shape: f32[4], index: 0, kind: input, shape index: {}]
  %s1 = inlined_call_operand.<no memory space> [shape: f32[1], index: 1, kind: input, shape index: {}]
  %s2 = inlined_call_operand.hbm [shape: f32[2,4,2,128], index: 2, kind: input, shape index: {}]
  %s3 = inlined_call_operand.hbm [shape: f32[2,2,128], index: 3, kind: output, shape index: {}]
  %s4 = sld [smem:[#allocation0]]
  $region53: #{tpu_custom_call.1} parent=0
    _
  %s6 = ssub.s32 1, %s4
  %s7 = scalar_select 0, %s6, %s4
  %8 = sst [smem:[#allocation2]] %s1
  $region1: #{tpu_custom_call.1} parent=0
    #allocation3 [shape = 'u8[512]{0}', space=smem, size = 0x200, scoped, tag = 'input window, operand 0, single buffered']
    #allocation4 [shape = 's32[2]{0}', space=sflag, size = 0x8, scoped, tag = 'scoped memory for tpu_custom_call.1']
    #allocation5 [shape = 's32[2]{0}', space=sflag, size = 0x8, scoped, tag = 'scoped memory for tpu_custom_call.1']
    #allocation6 [shape = 's32[2]{0}', space=sflag, size = 0x8, scoped, tag = 'scoped memory for tpu_custom_call.1']
    #allocation7 [shape = 'u8[8192]{0}', space=vmem, size = 0x2000, scoped, tag = 'input window, operand 2']
    #allocation8 [shape = 'u8[2048]{0}', space=vmem, size = 0x800, scoped, tag = 'output window, operand 0']
    %9 = vsyncpa [#allocation6], 0
    %10 = vsyncpa [#allocation4], 0
    %s11 = scalar_lea.sflag [#allocation4], 1
    %12 = vsyncpa %s11, 0
    %13 = vsyncpa [#allocation5], 0
    %s14 = scalar_lea.sflag [#allocation5], 1
    %15 = vsyncpa %s14, 0
    loop: start=0, step=1, limit=4
    $region2: #{tpu_custom_call.1} parent=1 // loop_pre_header
      _
    $region3: #{tpu_custom_call.1} parent=1 // loop_header
      %s17 = sphi 0, %s21
      %p18 = scmp.ge.s32.totalorder %s17, 4
      %s24 = sphi 0, %s36
      %s25 = sphi 0, %s32
      %s26 = sphi 0, %s24
      %s27 = sphi 0, %s25
      %s28 = sphi 0, %s26
      %s29 = sphi 0, %s27
      %s37 = sphi 0, %s37
      %s39 = sphi 0, %s37
      %s40 = sphi 0, %s39
      %s54 = sphi 0, %s40
      %s58 = sphi 0, %s58
      %s60 = sphi 0, %s58
      %s61 = sphi 0, %s60
      %s75 = sphi 0, %s61
      %s83 = sphi 0, %s85
      %s86 = sphi 0, %s83
      %s87 = sphi 0, %s86
      %s103 = sphi 0, %s87
      %s111 = sphi 0, %s113
      %s114 = sphi 0, %s111
      %s115 = sphi 0, %s114
      %s131 = sphi 0, %s115
    $region4: #{tpu_custom_call.1} parent=1 // loop_header_branch
      %20 = sbr.rel (%p18) target = $region8
    $region5: #{tpu_custom_call.1} parent=1 // loop_body
      %s22 = ssub.s32 %s17, 1
      %s23 = ssub.s32 %s17, 2
      %s30 = sadd.s32 1, %s25
      %p31 = scmp.ge.s32.totalorder %s30, 1
      %s32 = scalar_select %p31, 0, %s30
      %s33 = sadd.s32 1, %s24
      %s34 = scalar_select %p31, %s33, %s24
      %p35 = scmp.ge.s32.totalorder %s34, 2
      %s36 = scalar_select %p35, 0, %s34
      %s38 = sadd.s32 %s37, 1
      %p41 = scmp.eq.s32.totalorder %s17, 1
      %p42 = scmp.ne.s32.totalorder %s37, %s39
      %p43 = scmp.eq.s32.totalorder %s17, 0
      %p44 = por %p42, %p43
      %p45 = scmp.ne.s32.totalorder %s37, %s39
      %p46 = scmp.eq.s32.totalorder %s22, 1
      %p47 = por %p45, %p46
      %p48 = scmp.ne.s32.totalorder %s39, %s40
      %p49 = scmp.eq.s32.totalorder %s22, 0
      %p50 = por %p48, %p49
      %p51 = scmp.ne.s32.totalorder %s39, %s40
      %p52 = scmp.eq.s32.totalorder %s23, 1
      %p53 = por %p51, %p52
      %p55 = scmp.ne.s32.totalorder %s40, %s54
      %p56 = scmp.eq.s32.totalorder %s23, 0
      %p57 = por %p55, %p56
      %s59 = sadd.s32 %s58, 1
      %p62 = scmp.eq.s32.totalorder %s17, 1
      %p63 = scmp.ne.s32.totalorder %s58, %s60
      %p64 = scmp.eq.s32.totalorder %s17, 0
      %p65 = por %p63, %p64
      %p66 = scmp.ne.s32.totalorder %s58, %s60
      %p67 = scmp.eq.s32.totalorder %s22, 1
      %p68 = por %p66, %p67
      %p69 = scmp.ne.s32.totalorder %s60, %s61
      %p70 = scmp.eq.s32.totalorder %s22, 0
      %p71 = por %p69, %p70
      %p72 = scmp.ne.s32.totalorder %s60, %s61
      %p73 = scmp.eq.s32.totalorder %s23, 1
      %p74 = por %p72, %p73
      %p76 = scmp.ne.s32.totalorder %s61, %s75
      %p77 = scmp.eq.s32.totalorder %s23, 0
      %p78 = por %p76, %p77
      %s79 = ssub.s32 %s24, %s36
      %s80 = ssub.s32 %s25, %s32
      %s81 = sor.u32 %s79, %s80
      %p82 = scmp.eq.s32.totalorder %s81, 0
      %s84 = sadd.s32 %s83, 1
      %s85 = scalar_select %p82, %s83, %s84
      %p88 = pneg %p82
      %p89 = scmp.eq.s32.totalorder %s17, 1
      %p90 = por %p88, %p89
      %p91 = scmp.ne.s32.totalorder %s83, %s86
      %p92 = scmp.eq.s32.totalorder %s17, 0
      %p93 = por %p91, %p92
      %p94 = scmp.ne.s32.totalorder %s83, %s86
      %p95 = scmp.eq.s32.totalorder %s22, 1
      %p96 = por %p94, %p95
      %p97 = scmp.ne.s32.totalorder %s86, %s87
      %p98 = scmp.eq.s32.totalorder %s22, 0
      %p99 = por %p97, %p98
      %p100 = scmp.ne.s32.totalorder %s86, %s87
      %p101 = scmp.eq.s32.totalorder %s23, 1
      %p102 = por %p100, %p101
      %p104 = scmp.ne.s32.totalorder %s87, %s103
      %p105 = scmp.eq.s32.totalorder %s23, 0
      %p106 = por %p104, %p105
      %s107 = ssub.s32 %s24, %s36
      %s108 = ssub.s32 %s25, %s32
      %s109 = sor.u32 %s107, %s108
      %p110 = scmp.eq.s32.totalorder %s109, 0
      %s112 = sadd.s32 %s111, 1
      %s113 = scalar_select %p110, %s111, %s112
      %p116 = pneg %p110
      %p117 = scmp.eq.s32.totalorder %s17, 1
      %p118 = por %p116, %p117
      %p119 = scmp.ne.s32.totalorder %s111, %s114
      %p120 = scmp.eq.s32.totalorder %s17, 0
      %p121 = por %p119, %p120
      %p122 = scmp.ne.s32.totalorder %s111, %s114
      %p123 = scmp.eq.s32.totalorder %s22, 1
      %p124 = por %p122, %p123
      %p125 = scmp.ne.s32.totalorder %s114, %s115
      %p126 = scmp.eq.s32.totalorder %s22, 0
      %p127 = por %p125, %p126
      %p128 = scmp.ne.s32.totalorder %s114, %s115
      %p129 = scmp.eq.s32.totalorder %s23, 1
      %p130 = por %p128, %p129
      %p132 = scmp.ne.s32.totalorder %s115, %s131
      %p133 = scmp.eq.s32.totalorder %s23, 0
      %p134 = por %p132, %p133
      %p135 = scmp.le.s32.totalorder 1, %s17
      %p136 = scmp.lt.s32.totalorder %s17, 3
      %p137 = pnand %p135, %p136
      %p138 = pneg %p137
      // Predicated region
      $region9: #{tpu_custom_call.1} parent=5 // pred_check
        _
      $region10: #{tpu_custom_call.1} parent=5 // pred_check_branch
        %140 = sbr.rel (%p137) target = $region12
      $region11: #{tpu_custom_call.1} parent=5 // pred_region
        %s141 = ssub.s32 %s17, 1
        // Predicated region
        $region13: #{tpu_custom_call.1} parent=11 // pred_check
          %p142 = pneg %p50
        $region14: #{tpu_custom_call.1} parent=11 // pred_check_branch
          %144 = sbr.rel (%p142) target = $region16
        $region15: #{tpu_custom_call.1} parent=11 // pred_region
          %146 = vsyncadd [#allocation6], 0
          %s148 = sshll.u32 %s0, 4
          %s149 = int_to_ptr.vmem [resolvable:$true] %s148
          %151 = dma.vmem_to_smem %s149, 16, [#allocation3], [#allocation6]
        $region16: #{tpu_custom_call.1} parent=11 // pred_fallthru
          _
        // Predicated region
        $region17: #{tpu_custom_call.1} parent=11 // pred_check
          %p152 = pneg %p71
        $region18: #{tpu_custom_call.1} parent=11 // pred_check_branch
          %154 = sbr.rel (%p152) target = $region20
        $region19: #{tpu_custom_call.1} parent=11 // pred_region
          _
        $region20: #{tpu_custom_call.1} parent=11 // pred_fallthru
          _
      $region12: #{tpu_custom_call.1} parent=5 // pred_fallthru
        _
      %p155 = scmp.lt.s32.totalorder %s17, 2
      // Predicated region
      $region21: #{tpu_custom_call.1} parent=5 // pred_check
        %p156 = pneg %p155
      $region22: #{tpu_custom_call.1} parent=5 // pred_check_branch
        %158 = sbr.rel (%p156) target = $region24
      $region23: #{tpu_custom_call.1} parent=5 // pred_region
        // Predicated region
        $region25: #{tpu_custom_call.1} parent=23 // pred_check
          %p159 = pneg %p93
        $region26: #{tpu_custom_call.1} parent=23 // pred_check_branch
          %161 = sbr.rel (%p159) target = $region28
        $region27: #{tpu_custom_call.1} parent=23 // pred_region
          %s162 = sand.u32 %s83, 1
          %s163 = scalar_lea.sflag [#allocation4], %s162
          %s164 = sand.u32 %s83, 1
          %s165 = smul.addr %s164, 8
          %s166 = scalar_lea.vmem [#allocation7], %s165
          %168 = vsyncadd %s163, 0
          %s169 = smul.addr %s24, 4
          %s170 = sadd.s32 %s25, %s169
          %s171 = smul.addr %s170, 2
          %s172 = scalar_lea.hbm %s2, %s171
          %s173 = sshll.u32 %s172, 4
          %s174 = int_to_ptr.hbm [resolvable:$true] %s173
          %s175 = sshll.u32 %s166, 4
          %s176 = int_to_ptr.vmem [resolvable:$true] %s175
          %181 = dma.hbm_to_vmem [thread:$0]  %s174, 128, %s176, %s163, 32, 32, 2
        $region28: #{tpu_custom_call.1} parent=23 // pred_fallthru
          _
      $region24: #{tpu_custom_call.1} parent=5 // pred_fallthru
        _
      %p182 = scmp.le.s32.totalorder 1, %s17
      %p183 = scmp.lt.s32.totalorder %s17, 3
      %p184 = pnand %p182, %p183
      %p185 = pneg %p184
      // Predicated region
      $region29: #{tpu_custom_call.1} parent=5 // pred_check
        _
      $region30: #{tpu_custom_call.1} parent=5 // pred_check_branch
        %187 = sbr.rel (%p184) target = $region32
      $region31: #{tpu_custom_call.1} parent=5 // pred_region
        %s188 = ssub.s32 %s17, 1
        // Predicated region
        $region33: #{tpu_custom_call.1} parent=31 // pred_check
          %p189 = pneg %p50
        $region34: #{tpu_custom_call.1} parent=31 // pred_check_branch
          %191 = sbr.rel (%p189) target = $region36
        $region35: #{tpu_custom_call.1} parent=31 // pred_region
          %193 = dma.done [#allocation6], 16
        $region36: #{tpu_custom_call.1} parent=31 // pred_fallthru
          _
        %s194 = sand.u32 %s86, 1
        %s195 = scalar_lea.sflag [#allocation4], %s194
        %s196 = sand.u32 %s86, 1
        %s197 = smul.addr %s196, 8
        %s198 = scalar_lea.vmem [#allocation7], %s197
        // Predicated region
        $region37: #{tpu_custom_call.1} parent=31 // pred_check
          %p199 = pneg %p99
        $region38: #{tpu_custom_call.1} parent=31 // pred_check_branch
          %201 = sbr.rel (%p199) target = $region40
        $region39: #{tpu_custom_call.1} parent=31 // pred_region
          %203 = dma.done %s195, 128
        $region40: #{tpu_custom_call.1} parent=31 // pred_fallthru
          _
        %204 = sfence
        %p205 = pneg %p50
        %p206 = pneg %p47
        %p207 = pneg %p71
        %p208 = pneg %p68
        %s209 = sand.u32 %s86, 1
        %s210 = scalar_lea.sflag [#allocation4], %s209
        %s211 = sand.u32 %s86, 1
        %s212 = smul.addr %s211, 8
        %s213 = scalar_lea.vmem [#allocation7], %s212
        %p214 = pneg %p99
        %p215 = pneg %p96
        %p216 = pneg %p127
        %p217 = pneg %p124
        %s218 = sand.u32 %s114, 1
        %s219 = scalar_lea.sflag [#allocation5], %s218
        %s220 = sand.u32 %s114, 1
        %s221 = smul.addr %s220, 2
        %s222 = scalar_lea.vmem [#allocation8], %s221
        %v223 = vld [vmem:[%s198] sm:$0x3]
        %s224 = sld [smem:[#allocation3]]
        %v225 = vstv %s224
        %v226 = vmul.f32 %v223, %v225
        %s227 = scalar_lea.vmem %s198, 2 [#allocation7]
        %v228 = vld [vmem:[%s227] sm:$0x3]
        %s229 = sld [smem:[#allocation3 + $0x1]]
        %v230 = vstv %s229
        %v231 = vmul.f32 %v228, %v230
        %v232 = vadd.f32 %v226, %v231
        %s233 = scalar_lea.vmem %s198, 4 [#allocation7]
        %v234 = vld [vmem:[%s233] sm:$0x3]
        %s235 = sld [smem:[#allocation3 + $0x2]]
        %v236 = vstv %s235
        %v237 = vmul.f32 %v234, %v236
        %v238 = vadd.f32 %v232, %v237
        %s239 = scalar_lea.vmem %s198, 6 [#allocation7]
        %v240 = vld [vmem:[%s239] sm:$0x3]
        %s241 = sld [smem:[#allocation3 + $0x3]]
        %v242 = vstv %s241
        %v243 = vmul.f32 %v240, %v242
        %v244 = vadd.f32 %v238, %v243
        %s245 = sld [smem:[#allocation2]]
        %v246 = vstv %s245
        %v247 = vadd.f32 %v244, %v246
        %248 = vst [vmem:[%s222] sm:$0x3] %v247
        %s249 = sand.u32 %s114, 1
        %s250 = scalar_lea.sflag [#allocation5], %s249
        %s251 = sand.u32 %s114, 1
        %s252 = smul.addr %s251, 2
        %s253 = scalar_lea.vmem [#allocation8], %s252
        // Predicated region
        $region41: #{tpu_custom_call.1} parent=31 // pred_check
          %p254 = pneg %p124
        $region42: #{tpu_custom_call.1} parent=31 // pred_check_branch
          %256 = sbr.rel (%p254) target = $region44
        $region43: #{tpu_custom_call.1} parent=31 // pred_region
          %258 = vsyncadd %s250, 0
          %s259 = sadd.s32 %s27, %s26
          %s260 = smul.addr %s259, 2
          %s261 = scalar_lea.hbm %s3, %s260
          %s263 = sshll.u32 %s253, 4
          %s264 = int_to_ptr.vmem [resolvable:$true] %s263
          %s265 = sshll.u32 %s261, 4
          %s266 = int_to_ptr.hbm [resolvable:$true] %s265
          %268 = dma.vmem_to_hbm [thread:$0]  %s264, 32, %s266, %s250
        $region44: #{tpu_custom_call.1} parent=31 // pred_fallthru
          _
      $region32: #{tpu_custom_call.1} parent=5 // pred_fallthru
        _
      %p269 = scmp.le.s32.totalorder 2, %s17
      // Predicated region
      $region45: #{tpu_custom_call.1} parent=5 // pred_check
        %p270 = pneg %p269
      $region46: #{tpu_custom_call.1} parent=5 // pred_check_branch
        %272 = sbr.rel (%p270) target = $region48
      $region47: #{tpu_custom_call.1} parent=5 // pred_region
        %s273 = ssub.s32 %s17, 2
        // Predicated region
        $region49: #{tpu_custom_call.1} parent=47 // pred_check
          %p274 = pneg %p130
        $region50: #{tpu_custom_call.1} parent=47 // pred_check_branch
          %276 = sbr.rel (%p274) target = $region52
        $region51: #{tpu_custom_call.1} parent=47 // pred_region
          %s277 = sand.u32 %s115, 1
          %s278 = scalar_lea.sflag [#allocation5], %s277
          %s279 = sand.u32 %s115, 1
          %s280 = smul.addr %s279, 2
          %s281 = scalar_lea.vmem [#allocation8], %s280
          %283 = dma.done %s278, 32
        $region52: #{tpu_custom_call.1} parent=47 // pred_fallthru
          _
      $region48: #{tpu_custom_call.1} parent=5 // pred_fallthru
        _
    $region6: #{tpu_custom_call.1} parent=1 // loop_footer
      %s21 = sadd.s32 1, %s17
    $region7: #{tpu_custom_call.1} parent=1 // loop_footer_branch
      %16 = sbr.rel target = $region3
    $region8: #{tpu_custom_call.1} parent=1 // loop_exit
      _
    %284 = vsyncpa [#allocation4], 1
    %s285 = scalar_lea.sflag [#allocation4], 1
    %286 = vsyncpa %s285, 1
    %287 = vsyncpa [#allocation5], 1
    %s288 = scalar_lea.sflag [#allocation5], 1
    %289 = vsyncpa %s288, 1
    %290 = vsyncpa [#allocation6], 1
    %s291 = scalar_lea.sflag [#allocation6], 1
    %292 = vsyncpa %s291, 1

</llo_original>
